<compile_context>
chip_gen: v5e
topology: v5e:2x2
jax: 0.10.0
libtpu: 0.0.40
codegen_flags: <defaults>
</compile_context>

<pallas_src>
import numpy as np
import jax
import jax.numpy as jnp
from jax import lax
from jax.experimental import pallas as pl
from jax.experimental.pallas import tpu as pltpu

TEMPERATURE = 1.0    # self.temperature
M_NEG = 1000         # self.m  (per-sample negative subsample cap)
N_NEG = 2000         # self.n  (per-class cache cap)
K_BUCKET = 512       # negatives padded to multiples of this (lane aligned)

_RNG = np.random.default_rng(0)   # host-side stand-in for torch.randperm


def _round_up(x, m):
    return ((x + m - 1) // m) * m


# ----------------------------------------------------------------------------
# Weighted_GAP kernel (one stream).  Mask construction folded in.
#   feat : (1, C, HW)   native dtype, NCHW reshaped (no HBM transpose)
#   bg   : (1, NC, HW)  bg-head logits
#   lab  : (1, 1, HW)   nearest-resized label mask
#   out  : (1, 2, C)    row 0 = disrupt-mask pool, row 1 = label-mask pool
#   pool[k, c] = sum_hw feat[c,hw]*mask[k,hw] / (sum(mask[k]) + 5e-4)
# ----------------------------------------------------------------------------
def _wgap_kernel(feat_ref, bg_ref, lab_ref, out_ref):
    feat = feat_ref[0]                                   # (C, HW), native dtype
    bg = bg_ref[0].astype(jnp.float32)                   # (NC, HW)
    lab = lab_ref[0].astype(jnp.float32)                 # (1, HW)

    # channel argmax of the bg head (first-max-index tie behaviour), NC static
    nc = bg.shape[0]
    best = bg[0:1]
    arg = jnp.zeros_like(best)
    for c in range(1, nc):
        take = bg[c:c + 1] > best
        best = jnp.where(take, bg[c:c + 1], best)
        arg = jnp.where(take, float(c), arg)

    disrupt = jnp.maximum(1.0 - arg - lab, 0.0)          # (1, HW)
    mask = jnp.concatenate([disrupt, lab], axis=0)       # (2, HW)

    dn = (((1,), (1,)), ((), ()))                        # contract HW  (A @ B^T)
    num = lax.dot_general(mask.astype(feat.dtype), feat, dn,
                          preferred_element_type=jnp.float32)      # (2, C) on MXU
    area = jnp.sum(mask, axis=-1, keepdims=True) + 0.0005           # (2, 1)
    out_ref[0] = (num / area).astype(out_ref.dtype)


def weighted_gap_pools(feats, bg_out, labels_resized):
    """feats (B,C,H,W), bg_out (B,NC,H,W), labels_resized (B,1,H,W) -> (B,2,C) f32."""
    B, C, H, W = feats.shape
    HW = H * W
    NC = bg_out.shape[1]
    feat = feats.reshape(B, C, HW)                       # reshape only, no HBM transpose
    bg = bg_out.reshape(B, NC, HW)
    lab = labels_resized.reshape(B, 1, HW)

    return pl.pallas_call(
        _wgap_kernel,
        out_shape=jax.ShapeDtypeStruct((B, 2, C), jnp.float32),
        grid=(B,),
        in_specs=[
            pl.BlockSpec((1, C, HW), lambda b: (b, 0, 0)),
            pl.BlockSpec((1, NC, HW), lambda b: (b, 0, 0)),
            pl.BlockSpec((1, 1, HW), lambda b: (b, 0, 0)),
        ],
        out_specs=pl.BlockSpec((1, 2, C), lambda b: (b, 0, 0)),
        compiler_params=pltpu.CompilerParams(
            dimension_semantics=("parallel",),
            vmem_limit_bytes=64 * 1024 * 1024),          # v5e: 16 MiB default too small
    )(feat, bg, lab)


# ----------------------------------------------------------------------------
# Contrastive-loss kernel, one grid step per batch sample (grid sharded over B).
#   base/pos : (1, 1, C) f32   neg : (1, K, C) bf16
#   nn2/vmask: (1, 1, K) f32 (precomputed squared norms / validity)
#   out      : (1, 1, 1) per-sample loss
# ----------------------------------------------------------------------------
def _contrast_kernel(base_ref, pos_ref, neg_ref, nn2_ref, vmask_ref, out_ref):
    eps = 1e-8
    base = base_ref[0].astype(jnp.float32)               # (1, C)
    pos = pos_ref[0].astype(jnp.float32)                 # (1, C)
    nn2 = nn2_ref[0]                                     # (1, K) f32
    vmask = vmask_ref[0]                                 # (1, K) f32
    neg = neg_ref[0]                                     # (K, C) bf16

    bn2 = jnp.sum(base * base, axis=-1, keepdims=True)   # (1, 1)

    dn = (((1,), (1,)), ((), ()))                        # contract C  (A @ B^T)
    dots = lax.dot_general(base.astype(neg.dtype), neg, dn,
                           preferred_element_type=jnp.float32)     # (1, K) on MXU

    # 1 / max(||base||*||neg||, eps) via EUP rsqrt; padded rows give cos=0 and
    # are then zeroed by vmask after the exp.
    inv_den = lax.rsqrt(jnp.maximum(bn2 * nn2, eps * eps))
    neg_cos = dots * inv_den * (1.0 / TEMPERATURE)
    neg_logits = jnp.maximum(
        jnp.sum(jnp.exp(neg_cos) * vmask, axis=-1, keepdims=True), 1e-30)

    pn2 = jnp.sum(pos * pos, axis=-1, keepdims=True)
    pos_dot = jnp.sum(base * pos, axis=-1, keepdims=True)
    pos_cos = pos_dot * lax.rsqrt(jnp.maximum(bn2 * pn2, eps * eps))
    pos_cos = pos_cos * (1.0 / TEMPERATURE)

    out_ref[0] = -jnp.log(jnp.exp(pos_cos) / neg_logits + 1e-8)    # (1, 1)


def contrastive_loss(base_pro, pos_pro, neg_padded, nn2, valid_mask):
    B, C = base_pro.shape
    K = neg_padded.shape[1]
    per_sample = pl.pallas_call(
        _contrast_kernel,
        out_shape=jax.ShapeDtypeStruct((B, 1, 1), jnp.float32),
        grid=(B,),
        in_specs=[
            pl.BlockSpec((1, 1, C), lambda b: (b, 0, 0)),
            pl.BlockSpec((1, 1, C), lambda b: (b, 0, 0)),
            pl.BlockSpec((1, K, C), lambda b: (b, 0, 0)),
            pl.BlockSpec((1, 1, K), lambda b: (b, 0, 0)),
            pl.BlockSpec((1, 1, K), lambda b: (b, 0, 0)),
        ],
        out_specs=pl.BlockSpec((1, 1, 1), lambda b: (b, 0, 0)),
        compiler_params=pltpu.CompilerParams(dimension_semantics=("parallel",)),
    )(base_pro.reshape(B, 1, C).astype(jnp.float32),
      pos_pro.reshape(B, 1, C).astype(jnp.float32),
      neg_padded,
      nn2.reshape(B, 1, K).astype(jnp.float32),
      valid_mask.reshape(B, 1, K).astype(jnp.float32))
    return jnp.mean(per_sample)


# ----------------------------------------------------------------------------
# Glue (nearest resize, dict bookkeeping) — plain JAX / host python.
# ----------------------------------------------------------------------------
def interp_nearest(x, out_hw):
    # x: (B, C, Hin, Win); PyTorch 'nearest' = floor(dst * in/out)
    B, C, Hin, Win = x.shape
    Hout, Wout = out_hw
    ri = (jnp.arange(Hout) * Hin // Hout).astype(jnp.int32)
    ci = (jnp.arange(Wout) * Win // Wout).astype(jnp.int32)
    return x[:, :, ri[:, None], ci[None, :]]


def negative_construct(pros, labels_np):
    # pros: (B, C) jnp array, labels_np: host int array
    d = {}
    C = pros.shape[1]
    for u in np.unique(labels_np):
        idx = np.where(labels_np == u)[0]
        # reference code hardcodes .view(-1, 256); generalized to channel dim C
        d[int(u)] = pros[idx].reshape(-1, C)
    return d


def prototype_contrast_loss_forward(Q_feats, S_feats, Q_predit, Q_labels, S_labels,
                                    query_bg_out, supp_bg_out, classes, negative_dict):
    del Q_predit  # unused by the reference forward
    B, C, Hq, Wq = Q_feats.shape
    _, _, Hs, Ws = S_feats.shape

    Q_lab = interp_nearest(Q_labels[:, None].astype(jnp.float32), (Hq, Wq))  # (B,1,Hq,Wq)
    S_lab = interp_nearest(S_labels.astype(jnp.float32), (Hs, Ws))           # (B,1,Hs,Ws)

    # One Weighted_GAP launch per stream; masks are built inside the kernel.
    q_pools = weighted_gap_pools(Q_feats, query_bg_out, Q_lab)   # (B,2,C) f32
    s_pools = weighted_gap_pools(S_feats, supp_bg_out, S_lab)    # (B,2,C) f32
    Q_dsp_pro, Q_predit_pro = q_pools[:, 0], q_pools[:, 1]
    S_dsp_pro, S_GT_pro = s_pools[:, 0], s_pools[:, 1]

    classes_np = np.asarray(classes)
    # Negatives cached as bf16 -> halves the contrast kernel's dominant DMA.
    Q_dsp_dict = negative_construct(Q_dsp_pro.astype(jnp.bfloat16), classes_np)
    S_dsp_dict = negative_construct(S_dsp_pro.astype(jnp.bfloat16), classes_np)

    for key in Q_dsp_dict:
        if key not in negative_dict:
            negative_dict[key] = jnp.concatenate(
                [Q_dsp_dict[key], S_dsp_dict[key]], axis=0)
        else:
            negative_dict[key] = jnp.concatenate(
                [Q_dsp_dict[key], S_dsp_dict[key], negative_dict[key]], axis=0)
            if negative_dict[key].shape[0] > N_NEG:
                negative_dict[key] = negative_dict[key][:N_NEG]

    # Per-sample negative selection, host-side randperm subsampling (> m), and
    # zero-padding to a K_BUCKET-bucketed static size (lane aligned; at most a
    # handful of distinct compiles per training run).
    per_b_negs = []
    for c in classes_np:
        negs = negative_dict[int(c)]
        if negs.shape[0] > M_NEG:
            perm = _RNG.permutation(negs.shape[0])[:M_NEG]   # reference: torch.randperm
            negs = negs[jnp.asarray(perm, dtype=jnp.int32)]
        per_b_negs.append(negs)
    counts = np.array([int(n.shape[0]) for n in per_b_negs], dtype=np.int32)
    k_pad = max(K_BUCKET, _round_up(int(counts.max()), K_BUCKET))
    neg_padded = jnp.stack(
        [jnp.pad(n, ((0, k_pad - n.shape[0]), (0, 0))) for n in per_b_negs], axis=0)
    valid = jnp.asarray(
        (np.arange(k_pad)[None, :] < counts[:, None]).astype(np.float32))
    # Squared norms precomputed outside the kernel (bf16 only feeds the MXU).
    # TODO(synk): cache nn2 incrementally alongside negative_dict (prototypes
    # never change once stored) instead of recomputing this tiny op per call.
    nn2 = jnp.sum(jnp.square(neg_padded.astype(jnp.float32)), axis=-1)   # (B, Kpad)

    loss = contrastive_loss(Q_predit_pro, S_GT_pro, neg_padded, nn2, valid)
    return loss.reshape(1), negative_dict


if __name__ == "__main__":
    key = jax.random.PRNGKey(0)
    B, C, H, W = 2, 256, 16, 16   # C=256 matches the module's hardcoded .view(-1, 256)
    H0, W0 = 32, 32               # raw label resolution (resized down to H, W)
    ks = jax.random.split(key, 8)

    Q_feats = jax.random.normal(ks[0], (B, C, H, W), jnp.float32)
    S_feats = jax.random.normal(ks[1], (B, C, H, W), jnp.float32)
    Q_predit = jax.random.normal(ks[2], (B, 2, H, W), jnp.float32)   # unused by forward
    Q_labels = (jax.random.uniform(ks[3], (B, H0, W0)) > 0.5).astype(jnp.float32)
    S_labels = (jax.random.uniform(ks[4], (B, 1, H0, W0)) > 0.5).astype(jnp.float32)
    query_bg_out = jax.random.normal(ks[5], (B, 2, H, W), jnp.float32)
    supp_bg_out = jax.random.normal(ks[6], (B, 2, H, W), jnp.float32)
    classes = jnp.array([1, 2], dtype=jnp.int32)
    negative_dict = {}

    loss, negative_dict = prototype_contrast_loss_forward(
        Q_feats, S_feats, Q_predit, Q_labels, S_labels,
        query_bg_out, supp_bg_out, classes, negative_dict)
    # second call exercises the "class already in negative_dict" concat/truncate path
    # and reuses the same compiled kernels (bucketed static K padding).
    loss2, negative_dict = prototype_contrast_loss_forward(
        Q_feats, S_feats, Q_predit, Q_labels, S_labels,
        query_bg_out, supp_bg_out, classes, negative_dict)

    jax.block_until_ready((loss, loss2))
    print("KERNEL_OK")
</pallas_src>

<mosaic_0001>
module attributes {stable_mosaic.version = 11 : i64} {
  func.func @_wgap_kernel(%arg0: i32, %arg1: memref<1x256x256xf32, #tpu.memory_space<vmem>>, %arg2: memref<1x2x256xf32, #tpu.memory_space<vmem>>, %arg3: memref<1x1x256xf32, #tpu.memory_space<vmem>>, %arg4: memref<1x2x256xf32, #tpu.memory_space<vmem>>) attributes {dimension_semantics = [#tpu.dimension_semantics<parallel>], iteration_bounds = array<i64: 2>, scalar_prefetch = 0 : i64, scratch_operands = 0 : i64, tpu.core_type = #tpu.core_type<tc>, window_params = [{transform_indices = @transform_0, window_bounds = array<i64: 1, 256, 256>}, {transform_indices = @transform_1, window_bounds = array<i64: 1, 2, 256>}, {transform_indices = @transform_2, window_bounds = array<i64: 1, 1, 256>}, {transform_indices = @transform_3, window_bounds = array<i64: 1, 2, 256>}]} {
    %c0 = arith.constant 0 : index
    %c0_0 = arith.constant 0 : index
    %c0_1 = arith.constant 0 : index
    %0 = vector.load %arg1[%c0, %c0_0, %c0_1] : memref<1x256x256xf32, #tpu.memory_space<vmem>>, vector<1x256x256xf32>
    %1 = vector.shape_cast %0 : vector<1x256x256xf32> to vector<256x256xf32>
    %c0_2 = arith.constant 0 : index
    %c0_3 = arith.constant 0 : index
    %c0_4 = arith.constant 0 : index
    %2 = vector.load %arg2[%c0_2, %c0_3, %c0_4] : memref<1x2x256xf32, #tpu.memory_space<vmem>>, vector<1x2x256xf32>
    %3 = vector.shape_cast %2 : vector<1x2x256xf32> to vector<2x256xf32>
    %c0_5 = arith.constant 0 : index
    %c0_6 = arith.constant 0 : index
    %c0_7 = arith.constant 0 : index
    %4 = vector.load %arg3[%c0_5, %c0_6, %c0_7] : memref<1x1x256xf32, #tpu.memory_space<vmem>>, vector<1x1x256xf32>
    %5 = vector.shape_cast %4 : vector<1x1x256xf32> to vector<1x256xf32>
    %6 = vector.extract_strided_slice %3 {offsets = [0, 0], sizes = [1, 256], strides = [1, 1]} : vector<2x256xf32> to vector<1x256xf32>
    %cst = arith.constant 0.000000e+00 : f32
    %7 = vector.broadcast %cst : f32 to vector<1x256xf32>
    %8 = vector.extract_strided_slice %3 {offsets = [1, 0], sizes = [1, 256], strides = [1, 1]} : vector<2x256xf32> to vector<1x256xf32>
    %9 = arith.cmpf ogt, %8, %6 : vector<1x256xf32>
    %cst_8 = arith.constant 1.000000e+00 : f32
    %10 = vector.broadcast %cst_8 : f32 to vector<1x256xf32>
    %11 = arith.select %9, %10, %7 : vector<1x256xi1>, vector<1x256xf32>
    %cst_9 = arith.constant 1.000000e+00 : f32
    %12 = vector.broadcast %cst_9 : f32 to vector<1x256xf32>
    %13 = arith.subf %12, %11 : vector<1x256xf32>
    %14 = arith.subf %13, %5 : vector<1x256xf32>
    %cst_10 = arith.constant 0.000000e+00 : f32
    %15 = vector.broadcast %cst_10 : f32 to vector<1x256xf32>
    %16 = arith.maximumf %14, %15 : vector<1x256xf32>
    %17 = tpu.concatenate %16, %5 in 0 : vector<1x256xf32>, vector<1x256xf32> -> vector<2x256xf32>
    %cst_11 = arith.constant dense<0.000000e+00> : vector<2x256xf32>
    %18 = tpu.matmul %17, %1, %cst_11 {dimension_numbers = #tpu.dot_dimension_numbers<[1], [1], [0], [0], [0, 0, 1, 0], [], []>} : vector<2x256xf32>, vector<256x256xf32>, vector<2x256xf32> -> vector<2x256xf32>
    %cst_12 = arith.constant dense<0.000000e+00> : vector<2xf32>
    %19 = vector.multi_reduction <add>, %17, %cst_12 [1] : vector<2x256xf32> to vector<2xf32>
    %20 = vector.shape_cast %19 : vector<2xf32> to vector<2x1xf32>
    %cst_13 = arith.constant 5.000000e-04 : f32
    %21 = vector.broadcast %cst_13 : f32 to vector<2x1xf32>
    %22 = arith.addf %20, %21 : vector<2x1xf32>
    %23 = vector.broadcast %22 : vector<2x1xf32> to vector<2x256xf32>
    %24 = arith.divf %18, %23 : vector<2x256xf32>
    %c0_14 = arith.constant 0 : index
    %c0_15 = arith.constant 0 : index
    %c0_16 = arith.constant 0 : index
    %25 = vector.load %arg4[%c0_14, %c0_15, %c0_16] : memref<1x2x256xf32, #tpu.memory_space<vmem>>, vector<1x2x256xf32>
    %26 = vector.shape_cast %25 : vector<1x2x256xf32> to vector<2x256xf32>
    %27 = vector.shape_cast %24 : vector<2x256xf32> to vector<1x2x256xf32>
    tpu.vector_store %arg4[%c0_14, %c0_15, %c0_16], %27 {strides = array<i32>} : memref<1x2x256xf32, #tpu.memory_space<vmem>>, vector<1x2x256xf32>,
    return
  }
  func.func @transform_0(%arg0: i32) -> (i32, i32, i32) {
    %c0_i32 = arith.constant 0 : i32
    %c0_i32_0 = arith.constant 0 : i32
    %c0_i32_1 = arith.constant 0 : i32
    return %arg0, %c0_i32, %c0_i32_0 : i32, i32, i32
  }
  func.func @transform_1(%arg0: i32) -> (i32, i32, i32) {
    %c0_i32 = arith.constant 0 : i32
    %c0_i32_0 = arith.constant 0 : i32
    %c0_i32_1 = arith.constant 0 : i32
    return %arg0, %c0_i32, %c0_i32_0 : i32, i32, i32
  }
  func.func @transform_2(%arg0: i32) -> (i32, i32, i32) {
    %c0_i32 = arith.constant 0 : i32
    %c0_i32_0 = arith.constant 0 : i32
    %c0_i32_1 = arith.constant 0 : i32
    return %arg0, %c0_i32, %c0_i32_0 : i32, i32, i32
  }
  func.func @transform_3(%arg0: i32) -> (i32, i32, i32) {
    %c0_i32 = arith.constant 0 : i32
    %c0_i32_0 = arith.constant 0 : i32
    %c0_i32_1 = arith.constant 0 : i32
    return %arg0, %c0_i32, %c0_i32_0 : i32, i32, i32
  }
}

</mosaic_0001>

<llo_original>
// kernel: tpu_custom_call.1
$region0: #{tpu_custom_call.1}
  #allocation0 [shape = 'u32[]', space=smem, size = 0x4, offset = 0x4, fixed_abs, tag = 'smem constant byte address 0x4 - core index']
  #allocation1 [shape = 'u32[72,128]{1,0:T(1,128)}', space=vmem, size = 0x9000, scoped, tag = 'internal scratch']
  %s0 = inlined_call_operand.hbm [shape: f32[2,256,256], index: 0, kind: input, shape index: {}]
  %s1 = inlined_call_operand.hbm [shape: f32[2,2,256], index: 1, kind: input, shape index: {}]
  %s2 = inlined_call_operand.hbm [shape: f32[2,1,256], index: 2, kind: input, shape index: {}]
  %s3 = inlined_call_operand.hbm [shape: f32[2,2,256], index: 3, kind: output, shape index: {}]
  %s4 = sld [smem:[#allocation0]]
  $region57: #{tpu_custom_call.1} parent=0
    _
  %s6 = ssub.s32 1, %s4
  %s7 = scalar_select 0, %s6, %s4
  $region1: #{tpu_custom_call.1} parent=0
    #allocation2 [shape = 'u8[524288]{0}', space=vmem, size = 0x80000, scoped, tag = 'input window, operand 0']
    #allocation3 [shape = 's32[2]{0}', space=sflag, size = 0x8, scoped, tag = 'scoped memory for tpu_custom_call.1']
    #allocation4 [shape = 's32[2]{0}', space=sflag, size = 0x8, scoped, tag = 'scoped memory for tpu_custom_call.1']
    #allocation5 [shape = 'u8[4096]{0}', space=vmem, size = 0x1000, scoped, tag = 'input window, operand 1']
    #allocation6 [shape = 's32[2]{0}', space=sflag, size = 0x8, scoped, tag = 'scoped memory for tpu_custom_call.1']
    #allocation7 [shape = 'u8[2048]{0}', space=vmem, size = 0x800, scoped, tag = 'input window, operand 2']
    #allocation8 [shape = 'u8[4096]{0}', space=vmem, size = 0x1000, scoped, tag = 'output window, operand 0']
    %8 = vsyncpa [#allocation3], 0
    %s9 = scalar_lea.sflag [#allocation3], 1
    %10 = vsyncpa %s9, 0
    %11 = vsyncpa [#allocation6], 0
    %s12 = scalar_lea.sflag [#allocation6], 1
    %13 = vsyncpa %s12, 0
    %14 = vsyncpa [#allocation4], 0
    %s15 = scalar_lea.sflag [#allocation4], 1
    %16 = vsyncpa %s15, 0
    loop: start=0, step=1, limit=4
    $region2: #{tpu_custom_call.1} parent=1 // loop_pre_header
      _
    $region3: #{tpu_custom_call.1} parent=1 // loop_header
      %s18 = sphi 0, %s22
      %p19 = scmp.ge.s32.totalorder %s18, 4
      %s28 = sphi 0, %s30
      %s31 = sphi 0, %s28
      %s32 = sphi 0, %s31
      %s48 = sphi 0, %s32
      %s54 = sphi 0, %s56
      %s57 = sphi 0, %s54
      %s58 = sphi 0, %s57
      %s74 = sphi 0, %s58
      %s80 = sphi 0, %s82
      %s83 = sphi 0, %s80
      %s84 = sphi 0, %s83
      %s100 = sphi 0, %s84
      %s106 = sphi 0, %s108
      %s109 = sphi 0, %s106
      %s110 = sphi 0, %s109
      %s126 = sphi 0, %s110
    $region4: #{tpu_custom_call.1} parent=1 // loop_header_branch
      %21 = sbr.rel (%p19) target = $region8
    $region5: #{tpu_custom_call.1} parent=1 // loop_body
      %s23 = ssub.s32 %s18, 1
      %s24 = ssub.s32 %s18, 2
      %s25 = sadd.s32 %s18, 1
      %s26 = ssub.s32 %s18, %s25
      %p27 = scmp.eq.s32.totalorder %s26, 0
      %s29 = sadd.s32 %s28, 1
      %s30 = scalar_select %p27, %s28, %s29
      %p33 = pneg %p27
      %p34 = scmp.eq.s32.totalorder %s18, 1
      %p35 = por %p33, %p34
      %p36 = scmp.ne.s32.totalorder %s28, %s31
      %p37 = scmp.eq.s32.totalorder %s18, 0
      %p38 = por %p36, %p37
      %p39 = scmp.ne.s32.totalorder %s28, %s31
      %p40 = scmp.eq.s32.totalorder %s23, 1
      %p41 = por %p39, %p40
      %p42 = scmp.ne.s32.totalorder %s31, %s32
      %p43 = scmp.eq.s32.totalorder %s23, 0
      %p44 = por %p42, %p43
      %p45 = scmp.ne.s32.totalorder %s31, %s32
      %p46 = scmp.eq.s32.totalorder %s24, 1
      %p47 = por %p45, %p46
      %p49 = scmp.ne.s32.totalorder %s32, %s48
      %p50 = scmp.eq.s32.totalorder %s24, 0
      %p51 = por %p49, %p50
      %s52 = ssub.s32 %s18, %s25
      %p53 = scmp.eq.s32.totalorder %s52, 0
      %s55 = sadd.s32 %s54, 1
      %s56 = scalar_select %p53, %s54, %s55
      %p59 = pneg %p53
      %p60 = scmp.eq.s32.totalorder %s18, 1
      %p61 = por %p59, %p60
      %p62 = scmp.ne.s32.totalorder %s54, %s57
      %p63 = scmp.eq.s32.totalorder %s18, 0
      %p64 = por %p62, %p63
      %p65 = scmp.ne.s32.totalorder %s54, %s57
      %p66 = scmp.eq.s32.totalorder %s23, 1
      %p67 = por %p65, %p66
      %p68 = scmp.ne.s32.totalorder %s57, %s58
      %p69 = scmp.eq.s32.totalorder %s23, 0
      %p70 = por %p68, %p69
      %p71 = scmp.ne.s32.totalorder %s57, %s58
      %p72 = scmp.eq.s32.totalorder %s24, 1
      %p73 = por %p71, %p72
      %p75 = scmp.ne.s32.totalorder %s58, %s74
      %p76 = scmp.eq.s32.totalorder %s24, 0
      %p77 = por %p75, %p76
      %s78 = ssub.s32 %s18, %s25
      %p79 = scmp.eq.s32.totalorder %s78, 0
      %s81 = sadd.s32 %s80, 1
      %s82 = scalar_select %p79, %s80, %s81
      %p85 = pneg %p79
      %p86 = scmp.eq.s32.totalorder %s18, 1
      %p87 = por %p85, %p86
      %p88 = scmp.ne.s32.totalorder %s80, %s83
      %p89 = scmp.eq.s32.totalorder %s18, 0
      %p90 = por %p88, %p89
      %p91 = scmp.ne.s32.totalorder %s80, %s83
      %p92 = scmp.eq.s32.totalorder %s23, 1
      %p93 = por %p91, %p92
      %p94 = scmp.ne.s32.totalorder %s83, %s84
      %p95 = scmp.eq.s32.totalorder %s23, 0
      %p96 = por %p94, %p95
      %p97 = scmp.ne.s32.totalorder %s83, %s84
      %p98 = scmp.eq.s32.totalorder %s24, 1
      %p99 = por %p97, %p98
      %p101 = scmp.ne.s32.totalorder %s84, %s100
      %p102 = scmp.eq.s32.totalorder %s24, 0
      %p103 = por %p101, %p102
      %s104 = ssub.s32 %s18, %s25
      %p105 = scmp.eq.s32.totalorder %s104, 0
      %s107 = sadd.s32 %s106, 1
      %s108 = scalar_select %p105, %s106, %s107
      %p111 = pneg %p105
      %p112 = scmp.eq.s32.totalorder %s18, 1
      %p113 = por %p111, %p112
      %p114 = scmp.ne.s32.totalorder %s106, %s109
      %p115 = scmp.eq.s32.totalorder %s18, 0
      %p116 = por %p114, %p115
      %p117 = scmp.ne.s32.totalorder %s106, %s109
      %p118 = scmp.eq.s32.totalorder %s23, 1
      %p119 = por %p117, %p118
      %p120 = scmp.ne.s32.totalorder %s109, %s110
      %p121 = scmp.eq.s32.totalorder %s23, 0
      %p122 = por %p120, %p121
      %p123 = scmp.ne.s32.totalorder %s109, %s110
      %p124 = scmp.eq.s32.totalorder %s24, 1
      %p125 = por %p123, %p124
      %p127 = scmp.ne.s32.totalorder %s110, %s126
      %p128 = scmp.eq.s32.totalorder %s24, 0
      %p129 = por %p127, %p128
      %p130 = scmp.le.s32.totalorder 1, %s18
      %p131 = scmp.lt.s32.totalorder %s18, 3
      %p132 = pnand %p130, %p131
      %p133 = pneg %p132
      // Predicated region
      $region9: #{tpu_custom_call.1} parent=5 // pred_check
        _
      $region10: #{tpu_custom_call.1} parent=5 // pred_check_branch
        %135 = sbr.rel (%p132) target = $region12
      $region11: #{tpu_custom_call.1} parent=5 // pred_region
        %s136 = ssub.s32 %s18, 1
      $region12: #{tpu_custom_call.1} parent=5 // pred_fallthru
        _
      %p137 = scmp.lt.s32.totalorder %s18, 2
      // Predicated region
      $region13: #{tpu_custom_call.1} parent=5 // pred_check
        %p138 = pneg %p137
      $region14: #{tpu_custom_call.1} parent=5 // pred_check_branch
        %140 = sbr.rel (%p138) target = $region16
      $region15: #{tpu_custom_call.1} parent=5 // pred_region
        // Predicated region
        $region17: #{tpu_custom_call.1} parent=15 // pred_check
          %p141 = pneg %p38
        $region18: #{tpu_custom_call.1} parent=15 // pred_check_branch
          %143 = sbr.rel (%p141) target = $region20
        $region19: #{tpu_custom_call.1} parent=15 // pred_region
          %s144 = sand.u32 %s28, 1
          %s145 = scalar_lea.sflag [#allocation3], %s144
          %s146 = sand.u32 %s28, 1
          %s147 = smul.addr %s146, 512
          %s148 = scalar_lea.vmem [#allocation2], %s147
          %150 = vsyncadd %s145, 0
          %s151 = smul.addr %s18, 64
          %s152 = smul.addr %s151, 8
          %s153 = scalar_lea.hbm %s0, %s152
          %s154 = sshll.u32 %s153, 4
          %s155 = int_to_ptr.hbm [resolvable:$true] %s154
          %s156 = sshll.u32 %s148, 4
          %s157 = int_to_ptr.vmem [resolvable:$true] %s156
          %162 = dma.hbm_to_vmem [thread:$0]  %s155, 8192, %s157, %s145, 256, 256, 16
        $region20: #{tpu_custom_call.1} parent=15 // pred_fallthru
          _
        // Predicated region
        $region21: #{tpu_custom_call.1} parent=15 // pred_check
          %p163 = pneg %p64
        $region22: #{tpu_custom_call.1} parent=15 // pred_check_branch
          %165 = sbr.rel (%p163) target = $region24
        $region23: #{tpu_custom_call.1} parent=15 // pred_region
          %s166 = sand.u32 %s18, 1
          %s167 = scalar_lea.sflag [#allocation6], %s166
          %s168 = sand.u32 %s54, 1
          %s169 = smul.addr %s168, 4
          %s170 = scalar_lea.vmem [#allocation5], %s169
          %172 = vsyncadd %s167, 0
          %s173 = smul.addr %s18, 2
          %s174 = smul.addr %s173, 2
          %s175 = scalar_lea.hbm %s1, %s174
          %s177 = sshll.u32 %s175, 4
          %s178 = int_to_ptr.hbm [resolvable:$true] %s177
          %s179 = sshll.u32 %s170, 4
          %s180 = int_to_ptr.vmem [resolvable:$true] %s179
          %182 = dma.hbm_to_vmem [thread:$0]  %s178, 64, %s180, %s167
        $region24: #{tpu_custom_call.1} parent=15 // pred_fallthru
          _
        // Predicated region
        $region25: #{tpu_custom_call.1} parent=15 // pred_check
          %p183 = pneg %p90
        $region26: #{tpu_custom_call.1} parent=15 // pred_check_branch
          %185 = sbr.rel (%p183) target = $region28
        $region27: #{tpu_custom_call.1} parent=15 // pred_region
          %s186 = sand.u32 %s18, 1
          %s187 = scalar_lea.sflag [#allocation6], %s186
          %s188 = sand.u32 %s80, 1
          %s189 = smul.addr %s188, 2
          %s190 = scalar_lea.vmem [#allocation7], %s189
          %192 = vsyncadd %s187, 0
          %s193 = smul.addr %s18, 2
          %s194 = scalar_lea.hbm %s2, %s193
          %s196 = sshll.u32 %s194, 4
          %s197 = int_to_ptr.hbm [resolvable:$true] %s196
          %s198 = sshll.u32 %s190, 4
          %s199 = int_to_ptr.vmem [resolvable:$true] %s198
          %201 = dma.hbm_to_vmem [thread:$0]  %s197, 32, %s199, %s187
        $region28: #{tpu_custom_call.1} parent=15 // pred_fallthru
          _
      $region16: #{tpu_custom_call.1} parent=5 // pred_fallthru
        _
      %p202 = scmp.le.s32.totalorder 1, %s18
      %p203 = scmp.lt.s32.totalorder %s18, 3
      %p204 = pnand %p202, %p203
      %p205 = pneg %p204
      // Predicated region
      $region29: #{tpu_custom_call.1} parent=5 // pred_check
        _
      $region30: #{tpu_custom_call.1} parent=5 // pred_check_branch
        %207 = sbr.rel (%p204) target = $region32
      $region31: #{tpu_custom_call.1} parent=5 // pred_region
        %s208 = ssub.s32 %s18, 1
        %s209 = sand.u32 %s31, 1
        %s210 = scalar_lea.sflag [#allocation3], %s209
        %s211 = sand.u32 %s31, 1
        %s212 = smul.addr %s211, 512
        %s213 = scalar_lea.vmem [#allocation2], %s212
        // Predicated region
        $region33: #{tpu_custom_call.1} parent=31 // pred_check
          %p214 = pneg %p44
        $region34: #{tpu_custom_call.1} parent=31 // pred_check_branch
          %216 = sbr.rel (%p214) target = $region36
        $region35: #{tpu_custom_call.1} parent=31 // pred_region
          %218 = dma.done %s210, 8192
        $region36: #{tpu_custom_call.1} parent=31 // pred_fallthru
          _
        %s219 = sand.u32 %s23, 1
        %s220 = scalar_lea.sflag [#allocation6], %s219
        %s221 = sand.u32 %s57, 1
        %s222 = smul.addr %s221, 4
        %s223 = scalar_lea.vmem [#allocation5], %s222
        // Predicated region
        $region37: #{tpu_custom_call.1} parent=31 // pred_check
          %p224 = pneg %p70
        $region38: #{tpu_custom_call.1} parent=31 // pred_check_branch
          %226 = sbr.rel (%p224) target = $region40
        $region39: #{tpu_custom_call.1} parent=31 // pred_region
          %228 = dma.done %s220, 64
        $region40: #{tpu_custom_call.1} parent=31 // pred_fallthru
          _
        %s229 = sand.u32 %s23, 1
        %s230 = scalar_lea.sflag [#allocation6], %s229
        %s231 = sand.u32 %s83, 1
        %s232 = smul.addr %s231, 2
        %s233 = scalar_lea.vmem [#allocation7], %s232
        // Predicated region
        $region41: #{tpu_custom_call.1} parent=31 // pred_check
          %p234 = pneg %p96
        $region42: #{tpu_custom_call.1} parent=31 // pred_check_branch
          %236 = sbr.rel (%p234) target = $region44
        $region43: #{tpu_custom_call.1} parent=31 // pred_region
          %238 = dma.done %s230, 32
        $region44: #{tpu_custom_call.1} parent=31 // pred_fallthru
          _
        %s239 = sand.u32 %s31, 1
        %s240 = scalar_lea.sflag [#allocation3], %s239
        %s241 = sand.u32 %s31, 1
        %s242 = smul.addr %s241, 512
        %s243 = scalar_lea.vmem [#allocation2], %s242
        %p244 = pneg %p44
        %p245 = pneg %p41
        %s246 = sand.u32 %s23, 1
        %s247 = scalar_lea.sflag [#allocation6], %s246
        %s248 = sand.u32 %s57, 1
        %s249 = smul.addr %s248, 4
        %s250 = scalar_lea.vmem [#allocation5], %s249
        %p251 = pneg %p70
        %p252 = pneg %p67
        %s253 = sand.u32 %s23, 1
        %s254 = scalar_lea.sflag [#allocation6], %s253
        %s255 = sand.u32 %s83, 1
        %s256 = smul.addr %s255, 2
        %s257 = scalar_lea.vmem [#allocation7], %s256
        %p258 = pneg %p96
        %p259 = pneg %p93
        %p260 = pneg %p122
        %p261 = pneg %p119
        %s262 = sand.u32 %s109, 1
        %s263 = scalar_lea.sflag [#allocation4], %s262
        %s264 = sand.u32 %s109, 1
        %s265 = smul.addr %s264, 4
        %s266 = scalar_lea.vmem [#allocation8], %s265
        %v267 = vld [vmem:[%s213] sm:$0xff]
        %v268 = vld [vmem:[%s213 + $0x8] sm:$0xff]
        %v269 = vld [vmem:[%s213 + $0x10] sm:$0xff]
        %v270 = vld [vmem:[%s213 + $0x18] sm:$0xff]
        %v271 = vld [vmem:[%s213 + $0x20] sm:$0xff]
        %v272 = vld [vmem:[%s213 + $0x28] sm:$0xff]
        %v273 = vld [vmem:[%s213 + $0x30] sm:$0xff]
        %v274 = vld [vmem:[%s213 + $0x38] sm:$0xff]
        %v275 = vld [vmem:[%s213 + $0x40] sm:$0xff]
        %v276 = vld [vmem:[%s213 + $0x48] sm:$0xff]
        %v277 = vld [vmem:[%s213 + $0x50] sm:$0xff]
        %v278 = vld [vmem:[%s213 + $0x58] sm:$0xff]
        %v279 = vld [vmem:[%s213 + $0x60] sm:$0xff]
        %v280 = vld [vmem:[%s213 + $0x68] sm:$0xff]
        %v281 = vld [vmem:[%s213 + $0x70] sm:$0xff]
        %v282 = vld [vmem:[%s213 + $0x78] sm:$0xff]
        %v283 = vld [vmem:[%s213 + $0x80] sm:$0xff]
        %v284 = vld [vmem:[%s213 + $0x88] sm:$0xff]
        %v285 = vld [vmem:[%s213 + $0x90] sm:$0xff]
        %v286 = vld [vmem:[%s213 + $0x98] sm:$0xff]
        %v287 = vld [vmem:[%s213 + $0xa0] sm:$0xff]
        %v288 = vld [vmem:[%s213 + $0xa8] sm:$0xff]
        %v289 = vld [vmem:[%s213 + $0xb0] sm:$0xff]
        %v290 = vld [vmem:[%s213 + $0xb8] sm:$0xff]
        %v291 = vld [vmem:[%s213 + $0xc0] sm:$0xff]
        %v292 = vld [vmem:[%s213 + $0xc8] sm:$0xff]
        %v293 = vld [vmem:[%s213 + $0xd0] sm:$0xff]
        %v294 = vld [vmem:[%s213 + $0xd8] sm:$0xff]
        %v295 = vld [vmem:[%s213 + $0xe0] sm:$0xff]
        %v296 = vld [vmem:[%s213 + $0xe8] sm:$0xff]
        %v297 = vld [vmem:[%s213 + $0xf0] sm:$0xff]
        %v298 = vld [vmem:[%s213 + $0xf8] sm:$0xff]
        %v299 = vld [vmem:[%s213 + $0x100] sm:$0xff]
        %v300 = vld [vmem:[%s213 + $0x108] sm:$0xff]
        %v301 = vld [vmem:[%s213 + $0x110] sm:$0xff]
        %v302 = vld [vmem:[%s213 + $0x118] sm:$0xff]
        %v303 = vld [vmem:[%s213 + $0x120] sm:$0xff]
        %v304 = vld [vmem:[%s213 + $0x128] sm:$0xff]
        %v305 = vld [vmem:[%s213 + $0x130] sm:$0xff]
        %v306 = vld [vmem:[%s213 + $0x138] sm:$0xff]
        %v307 = vld [vmem:[%s213 + $0x140] sm:$0xff]
        %v308 = vld [vmem:[%s213 + $0x148] sm:$0xff]
        %v309 = vld [vmem:[%s213 + $0x150] sm:$0xff]
        %v310 = vld [vmem:[%s213 + $0x158] sm:$0xff]
        %v311 = vld [vmem:[%s213 + $0x160] sm:$0xff]
        %v312 = vld [vmem:[%s213 + $0x168] sm:$0xff]
        %v313 = vld [vmem:[%s213 + $0x170] sm:$0xff]
        %v314 = vld [vmem:[%s213 + $0x178] sm:$0xff]
        %v315 = vld [vmem:[%s213 + $0x180] sm:$0xff]
        %v316 = vld [vmem:[%s213 + $0x188] sm:$0xff]
        %v317 = vld [vmem:[%s213 + $0x190] sm:$0xff]
        %v318 = vld [vmem:[%s213 + $0x198] sm:$0xff]
        %v319 = vld [vmem:[%s213 + $0x1a0] sm:$0xff]
        %v320 = vld [vmem:[%s213 + $0x1a8] sm:$0xff]
        %v321 = vld [vmem:[%s213 + $0x1b0] sm:$0xff]
        %v322 = vld [vmem:[%s213 + $0x1b8] sm:$0xff]
        %v323 = vld [vmem:[%s213 + $0x1c0] sm:$0xff]
        %v324 = vld [vmem:[%s213 + $0x1c8] sm:$0xff]
        %v325 = vld [vmem:[%s213 + $0x1d0] sm:$0xff]
        %v326 = vld [vmem:[%s213 + $0x1d8] sm:$0xff]
        %v327 = vld [vmem:[%s213 + $0x1e0] sm:$0xff]
        %v328 = vld [vmem:[%s213 + $0x1e8] sm:$0xff]
        %v329 = vld [vmem:[%s213 + $0x1f0] sm:$0xff]
        %v330 = vld [vmem:[%s213 + $0x1f8] sm:$0xff]
        %v331 = vld [vmem:[%s223] sm:$0xf]
        %v332 = vld [vmem:[%s233] sm:$0x3]
        %v334 = vrot.slane %v331, 7
        %vm336 = vcmp.gt.f32.partialorder %v331, %v334
        %v337 = vsel %vm336, 1.0, 0.0
        %v338 = vsub.f32 1.0, %v337
        %v341 = vunpack.c.l.s4 857870592
        %v342 = vunpack.c.0.s8 %v341
        %v343 = vperm.slane %v332, %v342
        %v345 = vsub.f32 %v338, %v343
        %v346 = vmax.f32 %v345, 0.0
        %v348 = vperm.slane %v346, 1
        %v349 = vperm.slane %v346, 3
        %v352 = vperm.slane %v332, 0
        %v353 = vperm.slane %v332, 1
        %vm356 = vcmask 1040384
        %v357 = vsel %vm356, %v348, %v352
        %v358 = vsel %vm356, %v349, %v353
        %359 = vmatpush.xpose.msra.mxu0 %v297
        %360 = vmatpush.xpose.msra.mxu0 %v295
        %361 = vmatpush.xpose.msra.mxu0 %v293
        %362 = vmatpush.xpose.msra.mxu0 %v291
        %363 = vmatpush.xpose.msra.mxu0 %v289
        %364 = vmatpush.xpose.msra.mxu0 %v287
        %365 = vmatpush.xpose.msra.mxu0 %v285
        %366 = vmatpush.xpose.msra.mxu0 %v283
        %367 = vmatpush.xpose.msra.mxu0 %v281
        %368 = vmatpush.xpose.msra.mxu0 %v279
        %369 = vmatpush.xpose.msra.mxu0 %v277
        %370 = vmatpush.xpose.msra.mxu0 %v275
        %371 = vmatpush.xpose.msra.mxu0 %v273
        %372 = vmatpush.xpose.msra.mxu0 %v271
        %373 = vmatpush.xpose.msra.mxu0 %v269
        %374 = vmatpush.xpose.msra.mxu0 %v267
        %375 = vmatmul.f32.gmra.mxu0 %v357
        %v376 = vpop.f32.mrf.mxu0
        %v377 = vadd.f32 0.0, %v376
        %378 = vdwg.mxu0
        %379 = vmatpush.xpose.msra.mxu0 %v298
        %380 = vmatpush.xpose.msra.mxu0 %v296
        %381 = vmatpush.xpose.msra.mxu0 %v294
        %382 = vmatpush.xpose.msra.mxu0 %v292
        %383 = vmatpush.xpose.msra.mxu0 %v290
        %384 = vmatpush.xpose.msra.mxu0 %v288
        %385 = vmatpush.xpose.msra.mxu0 %v286
        %386 = vmatpush.xpose.msra.mxu0 %v284
        %387 = vmatpush.xpose.msra.mxu0 %v282
        %388 = vmatpush.xpose.msra.mxu0 %v280
        %389 = vmatpush.xpose.msra.mxu0 %v278
        %390 = vmatpush.xpose.msra.mxu0 %v276
        %391 = vmatpush.xpose.msra.mxu0 %v274
        %392 = vmatpush.xpose.msra.mxu0 %v272
        %393 = vmatpush.xpose.msra.mxu0 %v270
        %394 = vmatpush.xpose.msra.mxu0 %v268
        %395 = vmatmul.f32.gmra.mxu0 %v358
        %v396 = vpop.f32.mrf.mxu0
        %v397 = vadd.f32 %v377, %v396
        %398 = vdwg.mxu0
        %399 = vmatpush.xpose.msra.mxu0 %v329
        %400 = vmatpush.xpose.msra.mxu0 %v327
        %401 = vmatpush.xpose.msra.mxu0 %v325
        %402 = vmatpush.xpose.msra.mxu0 %v323
        %403 = vmatpush.xpose.msra.mxu0 %v321
        %404 = vmatpush.xpose.msra.mxu0 %v319
        %405 = vmatpush.xpose.msra.mxu0 %v317
        %406 = vmatpush.xpose.msra.mxu0 %v315
        %407 = vmatpush.xpose.msra.mxu0 %v313
        %408 = vmatpush.xpose.msra.mxu0 %v311
        %409 = vmatpush.xpose.msra.mxu0 %v309
        %410 = vmatpush.xpose.msra.mxu0 %v307
        %411 = vmatpush.xpose.msra.mxu0 %v305
        %412 = vmatpush.xpose.msra.mxu0 %v303
        %413 = vmatpush.xpose.msra.mxu0 %v301
        %414 = vmatpush.xpose.msra.mxu0 %v299
        %415 = vmatmul.f32.gmra.mxu0 %v357
        %v416 = vpop.f32.mrf.mxu0
        %v417 = vadd.f32 0.0, %v416
        %418 = vdwg.mxu0
        %419 = vmatpush.xpose.msra.mxu0 %v330
        %420 = vmatpush.xpose.msra.mxu0 %v328
        %421 = vmatpush.xpose.msra.mxu0 %v326
        %422 = vmatpush.xpose.msra.mxu0 %v324
        %423 = vmatpush.xpose.msra.mxu0 %v322
        %424 = vmatpush.xpose.msra.mxu0 %v320
        %425 = vmatpush.xpose.msra.mxu0 %v318
        %426 = vmatpush.xpose.msra.mxu0 %v316
        %427 = vmatpush.xpose.msra.mxu0 %v314
        %428 = vmatpush.xpose.msra.mxu0 %v312
        %429 = vmatpush.xpose.msra.mxu0 %v310
        %430 = vmatpush.xpose.msra.mxu0 %v308
        %431 = vmatpush.xpose.msra.mxu0 %v306
        %432 = vmatpush.xpose.msra.mxu0 %v304
        %433 = vmatpush.xpose.msra.mxu0 %v302
        %434 = vmatpush.xpose.msra.mxu0 %v300
        %435 = vmatmul.f32.gmra.mxu0 %v358
        %v436 = vpop.f32.mrf.mxu0
        %v437 = vadd.f32 %v417, %v436
        %438 = vdwg.mxu0
        %vm439 = vcmask 1041408
        %v440 = vsel %vm439, %v357, 0.0
        %v441 = vsel %vm439, %v358, 0.0
        %v442 = vadd.f32 %v440, %v441
        %443 = vadd.xlane.f32.xlu0 %v442
        %v444 = vpop.xlane.xlu0 %443
        %v445 = vadd.f32 %v444, 0.0005
        %v446 = vrcp.pop %v445
        %v447 = vmul.f32 %v445, %v446
        %v448 = vsub.f32 1.0, %v447
        %v449 = vmul.f32 %v446, %v448
        %v450 = vadd.f32 %v446, %v449
        %vm451 = vweird.f32 %v445
        %vm452 = vweird.f32 %v446
        %vm453 = vmor %vm451, %vm452
        %v454 = vsel %vm453, %v446, %v450
        %v455 = vand.u32 2147483647, %v445
        %vm456 = vcmp.eq.f32.partialorder %v455, 8.507059e+37
        %v457 = vand.u32 %v445, 2147483648
        %v458 = vor.u32 1.1754944e-38, %v457
        %v459 = vsel %vm456, %v458, %v454
        %v460 = vmul.f32 %v397, %v459
        %v461 = vmul.f32 %v437, %v459
        %v464 = vrot.slane %v461, 6
        %v465 = vsel %vm439, %v460, %v464
        %467 = vst [vmem:[%s266] sm:$0xf] %v465
        %s468 = sand.u32 %s109, 1
        %s469 = scalar_lea.sflag [#allocation4], %s468
        %s470 = sand.u32 %s109, 1
        %s471 = smul.addr %s470, 4
        %s472 = scalar_lea.vmem [#allocation8], %s471
        // Predicated region
        $region45: #{tpu_custom_call.1} parent=31 // pred_check
          %p473 = pneg %p119
        $region46: #{tpu_custom_call.1} parent=31 // pred_check_branch
          %475 = sbr.rel (%p473) target = $region48
        $region47: #{tpu_custom_call.1} parent=31 // pred_region
          %477 = vsyncadd %s469, 0
          %s478 = smul.addr %s23, 2
          %s479 = smul.addr %s478, 2
          %s480 = scalar_lea.hbm %s3, %s479
          %s482 = sshll.u32 %s472, 4
          %s483 = int_to_ptr.vmem [resolvable:$true] %s482
          %s484 = sshll.u32 %s480, 4
          %s485 = int_to_ptr.hbm [resolvable:$true] %s484
          %487 = dma.vmem_to_hbm [thread:$0]  %s483, 64, %s485, %s469
        $region48: #{tpu_custom_call.1} parent=31 // pred_fallthru
          _
      $region32: #{tpu_custom_call.1} parent=5 // pred_fallthru
        _
      %p488 = scmp.le.s32.totalorder 2, %s18
      // Predicated region
      $region49: #{tpu_custom_call.1} parent=5 // pred_check
        %p489 = pneg %p488
      $region50: #{tpu_custom_call.1} parent=5 // pred_check_branch
        %491 = sbr.rel (%p489) target = $region52
      $region51: #{tpu_custom_call.1} parent=5 // pred_region
        %s492 = ssub.s32 %s18, 2
        // Predicated region
        $region53: #{tpu_custom_call.1} parent=51 // pred_check
          %p493 = pneg %p125
        $region54: #{tpu_custom_call.1} parent=51 // pred_check_branch
          %495 = sbr.rel (%p493) target = $region56
        $region55: #{tpu_custom_call.1} parent=51 // pred_region
          %s496 = sand.u32 %s110, 1
          %s497 = scalar_lea.sflag [#allocation4], %s496
          %s498 = sand.u32 %s110, 1
          %s499 = smul.addr %s498, 4
          %s500 = scalar_lea.vmem [#allocation8], %s499
          %502 = dma.done %s497, 64
        $region56: #{tpu_custom_call.1} parent=51 // pred_fallthru
          _
      $region52: #{tpu_custom_call.1} parent=5 // pred_fallthru
        _
    $region6: #{tpu_custom_call.1} parent=1 // loop_footer
      %s22 = sadd.s32 1, %s18
    $region7: #{tpu_custom_call.1} parent=1 // loop_footer_branch
      %17 = sbr.rel target = $region3
    $region8: #{tpu_custom_call.1} parent=1 // loop_exit
      _
    %503 = vsyncpa [#allocation3], 1
    %s504 = scalar_lea.sflag [#allocation3], 1
    %505 = vsyncpa %s504, 1
    %506 = vsyncpa [#allocation6], 1
    %s507 = scalar_lea.sflag [#allocation6], 1
    %508 = vsyncpa %s507, 1
    %509 = vsyncpa [#allocation4], 1
    %s510 = scalar_lea.sflag [#allocation4], 1
    %511 = vsyncpa %s510, 1

</llo_original>
